<compile_context>
chip_gen: v7x
topology: tpu7x:2x2x1
jax: 0.10.0
libtpu: 0.0.40
codegen_flags: <defaults>
</compile_context>

<pallas_src>
import numpy as np

import jax
import jax.numpy as jnp
from jax.experimental import pallas as pl
from jax.experimental.pallas import tpu as pltpu

# MaxPool2d hyper-parameters from the PyTorch module.
KH, KW = 6, 8      # kernel_size
SH, SW = 2, 2      # stride
PH, PW = 3, 4      # padding
DH, DW = 2, 2      # dilation

LANES = 128


def _pool_out_size(size, k, s, p, d, ceil_mode=True):
    """PyTorch pooling output-size formula (aten/src/ATen/native/Pool.h)."""
    eff = d * (k - 1) + 1
    num = size + 2 * p - eff
    if ceil_mode:
        out = -(-num // s) + 1
        # last window must start inside input + left padding
        if (out - 1) * s >= size + p:
            out -= 1
    else:
        out = num // s + 1
    return out


def _make_kernel(h_out, w_out):
    """Kernel over a halo'd, -inf padded, pruned, channels-last block.

    x_ref: (h_out + KH - 1, w_out + KW - 1, T)   where element [oh+j, ow+i, :]
           is tap (j, i) of output (oh, ow) (or -inf if that tap is padding).
    o_ref: (h_out, w_out, T)
    """

    def kernel(x_ref, o_ref):
        # Row pair-maxes shared across output rows: adjacent oh overlap in 5
        # of their 6 (stride-1 in halo coords) row taps, and a 6-row window
        # is max(pair(oh), pair(oh+2), pair(oh+4)).
        pair = {}

        def row_pair(r):
            if r not in pair:
                pair[r] = jnp.maximum(x_ref[r], x_ref[r + 1])
            return pair[r]

        # TODO(synk): for very large h_out move output rows onto a grid axis
        # (with an input-row halo) instead of fully unrolling this loop.
        for oh in range(h_out):
            # ---- row pooling: max over the 6 row taps --------------------
            acc = jnp.maximum(
                jnp.maximum(row_pair(oh), row_pair(oh + 2)), row_pair(oh + 4)
            )  # (w_out + KW - 1, T)

            # ---- column pooling: sliding max of width KW=8 ---------------
            # cp[c] = max(cols c, c+1); cq[c] = max(cols c .. c+3);
            # window at ow = max(cq[ow], cq[ow+4]) = max(cols ow .. ow+7).
            cp = jnp.maximum(acc[:-1], acc[1:])
            cq = jnp.maximum(cp[:-2], cp[2:])
            o_ref[oh] = jnp.maximum(cq[:w_out], cq[4:4 + w_out]).astype(o_ref.dtype)

    return kernel


def _pick_tile_nc(ncp, in_rows, in_cols):
    """Channel (lane) tile: lane-dense, VMEM-bounded, >=2 grid steps when possible."""
    per_lane_bytes = in_rows * in_cols * 4          # f32 input block bytes per lane
    budget = 6 * 1024 * 1024                        # per single input buffer (x2 for double-buffering)
    fit = max(LANES, (budget // max(per_lane_bytes, 1)) // LANES * LANES)
    tile = min(ncp, 256, fit)
    if ncp >= 2 * LANES:                            # leave >=2 steps so v7x megacore can shard channels
        tile = min(tile, max(LANES, (ncp // 2) // LANES * LANES))
    tile = max(LANES, tile)
    while ncp % tile:                               # keep the grid exactly divisible
        tile -= LANES
    return tile


@jax.jit
def maxpool2d_ceil_mode_true(x):
    """nn.MaxPool2d([6,8], stride=[2,2], padding=[3,4], dilation=2, ceil_mode=True)."""
    n, c, h, w = x.shape
    nc = n * c
    h_out = _pool_out_size(h, KH, SH, PH, DH)
    w_out = _pool_out_size(w, KW, SW, PW, DW)

    # Prune to the taps that are actually read: odd rows, even columns.
    hp = h // 2          # odd rows 1, 3, ...
    wp = (w + 1) // 2    # even cols 0, 2, ...

    # Halo'd layout: element [oh + j, ow + i, ch] is tap (j, i) of output
    # (oh, ow); -inf where the tap falls in padding / out of range (matches
    # PyTorch's -inf padding for max pooling, including fully-padded windows).
    l_h = h_out + KH - 1
    l_w = w_out + KW - 1
    pad_top, pad_left = 2, 2     # first taps: row -3 -> pruned -2, col -4 -> pruned -2
    pad_bot = max(0, l_h - pad_top - hp)
    pad_right = max(0, l_w - pad_left - wp)

    ncp = -(-nc // LANES) * LANES            # lane-dense channel count

    # NCHW -> pruned channels-last (Hp, Wp, N*C), then -inf halo + lane pad.
    x_pr = jnp.transpose(x.reshape(nc, h, w)[:, 1::2, 0::2], (1, 2, 0))
    x_pad = jnp.pad(
        x_pr,
        ((pad_top, pad_bot), (pad_left, pad_right), (0, ncp - nc)),
        constant_values=-jnp.inf,
    )[:l_h, :l_w, :]

    tile_nc = _pick_tile_nc(ncp, l_h, l_w)
    grid = (pl.cdiv(ncp, tile_nc),)

    in_block_bytes = l_h * l_w * tile_nc * 4
    out_block_bytes = h_out * w_out * tile_nc * 4
    vmem_limit = int(max(2 * (in_block_bytes + out_block_bytes) + (2 << 20),
                         32 * 1024 * 1024))

    out_t = pl.pallas_call(
        _make_kernel(h_out, w_out),
        out_shape=jax.ShapeDtypeStruct((h_out, w_out, ncp), x.dtype),
        grid=grid,
        in_specs=[pl.BlockSpec((l_h, l_w, tile_nc), lambda i: (0, 0, i))],
        out_specs=pl.BlockSpec((h_out, w_out, tile_nc), lambda i: (0, 0, i)),
        compiler_params=pltpu.CompilerParams(
            # channel tiles are independent -> shard across v7x's two TensorCores
            dimension_semantics=("parallel",),
            vmem_limit_bytes=vmem_limit,
        ),
        cost_estimate=pl.CostEstimate(
            flops=ncp * h_out * w_out * (KH + KW),   # separable max count
            transcendentals=0,
            bytes_accessed=(l_h * l_w * ncp + h_out * w_out * ncp) * 4,
        ),
    )(x_pad)

    # (H_out, W_out, ncp) -> NCHW (drop the lane padding first; output is small).
    out = out_t[:, :, :nc]
    return jnp.transpose(out, (2, 0, 1)).reshape(n, c, h_out, w_out)


if __name__ == "__main__":
    key = jax.random.PRNGKey(0)
    N, C, H, W = 2, 4, 16, 16
    x = jax.random.normal(key, (N, C, H, W), dtype=jnp.float32)

    out = jax.block_until_ready(maxpool2d_ceil_mode_true(x))

    # Reference: direct numpy emulation of torch.nn.MaxPool2d semantics
    # (padding / out-of-range taps excluded from the max, ceil_mode windows).
    x_np = np.asarray(x)
    Ho = _pool_out_size(H, KH, SH, PH, DH)
    Wo = _pool_out_size(W, KW, SW, PW, DW)
    ref = np.full((N, C, Ho, Wo), -np.inf, dtype=np.float32)
    for oh in range(Ho):
        for ow in range(Wo):
            for j in range(KH):
                hi = oh * SH - PH + j * DH
                if hi < 0 or hi >= H:
                    continue
                for i in range(KW):
                    wi = ow * SW - PW + i * DW
                    if wi < 0 or wi >= W:
                        continue
                    ref[:, :, oh, ow] = np.maximum(ref[:, :, oh, ow],
                                                   x_np[:, :, hi, wi])

    assert out.shape == (N, C, Ho, Wo), out.shape
    assert np.array_equal(np.asarray(out), ref), "mismatch vs reference"

    print("KERNEL_OK")
</pallas_src>

<mosaic_0001>
module attributes {stable_mosaic.version = 11 : i64} {
  func.func @kernel(%arg0: i32, %arg1: memref<12x13x128xf32, #tpu.memory_space<vmem>>, %arg2: memref<7x6x128xf32, #tpu.memory_space<vmem>>) attributes {dimension_semantics = [#tpu.dimension_semantics<parallel>], iteration_bounds = array<i64: 1>, scalar_prefetch = 0 : i64, scratch_operands = 0 : i64, tpu.core_type = #tpu.core_type<tc>, window_params = [{transform_indices = @transform_0, window_bounds = array<i64: 12, 13, 128>}, {transform_indices = @transform_1, window_bounds = array<i64: 7, 6, 128>}]} {
    %c0 = arith.constant 0 : index
    %c0_0 = arith.constant 0 : index
    %c0_1 = arith.constant 0 : index
    %0 = vector.load %arg1[%c0, %c0_0, %c0_1] : memref<12x13x128xf32, #tpu.memory_space<vmem>>, vector<1x13x128xf32>
    %1 = vector.shape_cast %0 : vector<1x13x128xf32> to vector<13x128xf32>
    %c1 = arith.constant 1 : index
    %c0_2 = arith.constant 0 : index
    %c0_3 = arith.constant 0 : index
    %2 = vector.load %arg1[%c1, %c0_2, %c0_3] : memref<12x13x128xf32, #tpu.memory_space<vmem>>, vector<1x13x128xf32>
    %3 = vector.shape_cast %2 : vector<1x13x128xf32> to vector<13x128xf32>
    %4 = arith.maximumf %1, %3 : vector<13x128xf32>
    %c2 = arith.constant 2 : index
    %c0_4 = arith.constant 0 : index
    %c0_5 = arith.constant 0 : index
    %5 = vector.load %arg1[%c2, %c0_4, %c0_5] : memref<12x13x128xf32, #tpu.memory_space<vmem>>, vector<1x13x128xf32>
    %6 = vector.shape_cast %5 : vector<1x13x128xf32> to vector<13x128xf32>
    %c3 = arith.constant 3 : index
    %c0_6 = arith.constant 0 : index
    %c0_7 = arith.constant 0 : index
    %7 = vector.load %arg1[%c3, %c0_6, %c0_7] : memref<12x13x128xf32, #tpu.memory_space<vmem>>, vector<1x13x128xf32>
    %8 = vector.shape_cast %7 : vector<1x13x128xf32> to vector<13x128xf32>
    %9 = arith.maximumf %6, %8 : vector<13x128xf32>
    %10 = arith.maximumf %4, %9 : vector<13x128xf32>
    %c4 = arith.constant 4 : index
    %c0_8 = arith.constant 0 : index
    %c0_9 = arith.constant 0 : index
    %11 = vector.load %arg1[%c4, %c0_8, %c0_9] : memref<12x13x128xf32, #tpu.memory_space<vmem>>, vector<1x13x128xf32>
    %12 = vector.shape_cast %11 : vector<1x13x128xf32> to vector<13x128xf32>
    %c5 = arith.constant 5 : index
    %c0_10 = arith.constant 0 : index
    %c0_11 = arith.constant 0 : index
    %13 = vector.load %arg1[%c5, %c0_10, %c0_11] : memref<12x13x128xf32, #tpu.memory_space<vmem>>, vector<1x13x128xf32>
    %14 = vector.shape_cast %13 : vector<1x13x128xf32> to vector<13x128xf32>
    %15 = arith.maximumf %12, %14 : vector<13x128xf32>
    %16 = arith.maximumf %10, %15 : vector<13x128xf32>
    %17 = vector.extract_strided_slice %16 {offsets = [0, 0], sizes = [12, 128], strides = [1, 1]} : vector<13x128xf32> to vector<12x128xf32>
    %18 = vector.extract_strided_slice %16 {offsets = [1, 0], sizes = [12, 128], strides = [1, 1]} : vector<13x128xf32> to vector<12x128xf32>
    %19 = arith.maximumf %17, %18 : vector<12x128xf32>
    %20 = vector.extract_strided_slice %19 {offsets = [0, 0], sizes = [10, 128], strides = [1, 1]} : vector<12x128xf32> to vector<10x128xf32>
    %21 = vector.extract_strided_slice %19 {offsets = [2, 0], sizes = [10, 128], strides = [1, 1]} : vector<12x128xf32> to vector<10x128xf32>
    %22 = arith.maximumf %20, %21 : vector<10x128xf32>
    %23 = vector.extract_strided_slice %22 {offsets = [0, 0], sizes = [6, 128], strides = [1, 1]} : vector<10x128xf32> to vector<6x128xf32>
    %24 = vector.extract_strided_slice %22 {offsets = [4, 0], sizes = [6, 128], strides = [1, 1]} : vector<10x128xf32> to vector<6x128xf32>
    %25 = arith.maximumf %23, %24 : vector<6x128xf32>
    %c0_12 = arith.constant 0 : index
    %c0_13 = arith.constant 0 : index
    %c0_14 = arith.constant 0 : index
    %26 = vector.load %arg2[%c0_12, %c0_13, %c0_14] : memref<7x6x128xf32, #tpu.memory_space<vmem>>, vector<1x6x128xf32>
    %27 = vector.shape_cast %26 : vector<1x6x128xf32> to vector<6x128xf32>
    %28 = vector.shape_cast %25 : vector<6x128xf32> to vector<1x6x128xf32>
    tpu.vector_store %arg2[%c0_12, %c0_13, %c0_14], %28 {strides = array<i32>} : memref<7x6x128xf32, #tpu.memory_space<vmem>>, vector<1x6x128xf32>,
    %c1_15 = arith.constant 1 : index
    %c0_16 = arith.constant 0 : index
    %c0_17 = arith.constant 0 : index
    %29 = vector.load %arg1[%c1_15, %c0_16, %c0_17] : memref<12x13x128xf32, #tpu.memory_space<vmem>>, vector<1x13x128xf32>
    %30 = vector.shape_cast %29 : vector<1x13x128xf32> to vector<13x128xf32>
    %c2_18 = arith.constant 2 : index
    %c0_19 = arith.constant 0 : index
    %c0_20 = arith.constant 0 : index
    %31 = vector.load %arg1[%c2_18, %c0_19, %c0_20] : memref<12x13x128xf32, #tpu.memory_space<vmem>>, vector<1x13x128xf32>
    %32 = vector.shape_cast %31 : vector<1x13x128xf32> to vector<13x128xf32>
    %33 = arith.maximumf %30, %32 : vector<13x128xf32>
    %c3_21 = arith.constant 3 : index
    %c0_22 = arith.constant 0 : index
    %c0_23 = arith.constant 0 : index
    %34 = vector.load %arg1[%c3_21, %c0_22, %c0_23] : memref<12x13x128xf32, #tpu.memory_space<vmem>>, vector<1x13x128xf32>
    %35 = vector.shape_cast %34 : vector<1x13x128xf32> to vector<13x128xf32>
    %c4_24 = arith.constant 4 : index
    %c0_25 = arith.constant 0 : index
    %c0_26 = arith.constant 0 : index
    %36 = vector.load %arg1[%c4_24, %c0_25, %c0_26] : memref<12x13x128xf32, #tpu.memory_space<vmem>>, vector<1x13x128xf32>
    %37 = vector.shape_cast %36 : vector<1x13x128xf32> to vector<13x128xf32>
    %38 = arith.maximumf %35, %37 : vector<13x128xf32>
    %39 = arith.maximumf %33, %38 : vector<13x128xf32>
    %c5_27 = arith.constant 5 : index
    %c0_28 = arith.constant 0 : index
    %c0_29 = arith.constant 0 : index
    %40 = vector.load %arg1[%c5_27, %c0_28, %c0_29] : memref<12x13x128xf32, #tpu.memory_space<vmem>>, vector<1x13x128xf32>
    %41 = vector.shape_cast %40 : vector<1x13x128xf32> to vector<13x128xf32>
    %c6 = arith.constant 6 : index
    %c0_30 = arith.constant 0 : index
    %c0_31 = arith.constant 0 : index
    %42 = vector.load %arg1[%c6, %c0_30, %c0_31] : memref<12x13x128xf32, #tpu.memory_space<vmem>>, vector<1x13x128xf32>
    %43 = vector.shape_cast %42 : vector<1x13x128xf32> to vector<13x128xf32>
    %44 = arith.maximumf %41, %43 : vector<13x128xf32>
    %45 = arith.maximumf %39, %44 : vector<13x128xf32>
    %46 = vector.extract_strided_slice %45 {offsets = [0, 0], sizes = [12, 128], strides = [1, 1]} : vector<13x128xf32> to vector<12x128xf32>
    %47 = vector.extract_strided_slice %45 {offsets = [1, 0], sizes = [12, 128], strides = [1, 1]} : vector<13x128xf32> to vector<12x128xf32>
    %48 = arith.maximumf %46, %47 : vector<12x128xf32>
    %49 = vector.extract_strided_slice %48 {offsets = [0, 0], sizes = [10, 128], strides = [1, 1]} : vector<12x128xf32> to vector<10x128xf32>
    %50 = vector.extract_strided_slice %48 {offsets = [2, 0], sizes = [10, 128], strides = [1, 1]} : vector<12x128xf32> to vector<10x128xf32>
    %51 = arith.maximumf %49, %50 : vector<10x128xf32>
    %52 = vector.extract_strided_slice %51 {offsets = [0, 0], sizes = [6, 128], strides = [1, 1]} : vector<10x128xf32> to vector<6x128xf32>
    %53 = vector.extract_strided_slice %51 {offsets = [4, 0], sizes = [6, 128], strides = [1, 1]} : vector<10x128xf32> to vector<6x128xf32>
    %54 = arith.maximumf %52, %53 : vector<6x128xf32>
    %c1_32 = arith.constant 1 : index
    %c0_33 = arith.constant 0 : index
    %c0_34 = arith.constant 0 : index
    %55 = vector.load %arg2[%c1_32, %c0_33, %c0_34] : memref<7x6x128xf32, #tpu.memory_space<vmem>>, vector<1x6x128xf32>
    %56 = vector.shape_cast %55 : vector<1x6x128xf32> to vector<6x128xf32>
    %57 = vector.shape_cast %54 : vector<6x128xf32> to vector<1x6x128xf32>
    tpu.vector_store %arg2[%c1_32, %c0_33, %c0_34], %57 {strides = array<i32>} : memref<7x6x128xf32, #tpu.memory_space<vmem>>, vector<1x6x128xf32>,
    %58 = arith.maximumf %9, %15 : vector<13x128xf32>
    %c6_35 = arith.constant 6 : index
    %c0_36 = arith.constant 0 : index
    %c0_37 = arith.constant 0 : index
    %59 = vector.load %arg1[%c6_35, %c0_36, %c0_37] : memref<12x13x128xf32, #tpu.memory_space<vmem>>, vector<1x13x128xf32>
    %60 = vector.shape_cast %59 : vector<1x13x128xf32> to vector<13x128xf32>
    %c7 = arith.constant 7 : index
    %c0_38 = arith.constant 0 : index
    %c0_39 = arith.constant 0 : index
    %61 = vector.load %arg1[%c7, %c0_38, %c0_39] : memref<12x13x128xf32, #tpu.memory_space<vmem>>, vector<1x13x128xf32>
    %62 = vector.shape_cast %61 : vector<1x13x128xf32> to vector<13x128xf32>
    %63 = arith.maximumf %60, %62 : vector<13x128xf32>
    %64 = arith.maximumf %58, %63 : vector<13x128xf32>
    %65 = vector.extract_strided_slice %64 {offsets = [0, 0], sizes = [12, 128], strides = [1, 1]} : vector<13x128xf32> to vector<12x128xf32>
    %66 = vector.extract_strided_slice %64 {offsets = [1, 0], sizes = [12, 128], strides = [1, 1]} : vector<13x128xf32> to vector<12x128xf32>
    %67 = arith.maximumf %65, %66 : vector<12x128xf32>
    %68 = vector.extract_strided_slice %67 {offsets = [0, 0], sizes = [10, 128], strides = [1, 1]} : vector<12x128xf32> to vector<10x128xf32>
    %69 = vector.extract_strided_slice %67 {offsets = [2, 0], sizes = [10, 128], strides = [1, 1]} : vector<12x128xf32> to vector<10x128xf32>
    %70 = arith.maximumf %68, %69 : vector<10x128xf32>
    %71 = vector.extract_strided_slice %70 {offsets = [0, 0], sizes = [6, 128], strides = [1, 1]} : vector<10x128xf32> to vector<6x128xf32>
    %72 = vector.extract_strided_slice %70 {offsets = [4, 0], sizes = [6, 128], strides = [1, 1]} : vector<10x128xf32> to vector<6x128xf32>
    %73 = arith.maximumf %71, %72 : vector<6x128xf32>
    %c2_40 = arith.constant 2 : index
    %c0_41 = arith.constant 0 : index
    %c0_42 = arith.constant 0 : index
    %74 = vector.load %arg2[%c2_40, %c0_41, %c0_42] : memref<7x6x128xf32, #tpu.memory_space<vmem>>, vector<1x6x128xf32>
    %75 = vector.shape_cast %74 : vector<1x6x128xf32> to vector<6x128xf32>
    %76 = vector.shape_cast %73 : vector<6x128xf32> to vector<1x6x128xf32>
    tpu.vector_store %arg2[%c2_40, %c0_41, %c0_42], %76 {strides = array<i32>} : memref<7x6x128xf32, #tpu.memory_space<vmem>>, vector<1x6x128xf32>,
    %77 = arith.maximumf %38, %44 : vector<13x128xf32>
    %c7_43 = arith.constant 7 : index
    %c0_44 = arith.constant 0 : index
    %c0_45 = arith.constant 0 : index
    %78 = vector.load %arg1[%c7_43, %c0_44, %c0_45] : memref<12x13x128xf32, #tpu.memory_space<vmem>>, vector<1x13x128xf32>
    %79 = vector.shape_cast %78 : vector<1x13x128xf32> to vector<13x128xf32>
    %c8 = arith.constant 8 : index
    %c0_46 = arith.constant 0 : index
    %c0_47 = arith.constant 0 : index
    %80 = vector.load %arg1[%c8, %c0_46, %c0_47] : memref<12x13x128xf32, #tpu.memory_space<vmem>>, vector<1x13x128xf32>
    %81 = vector.shape_cast %80 : vector<1x13x128xf32> to vector<13x128xf32>
    %82 = arith.maximumf %79, %81 : vector<13x128xf32>
    %83 = arith.maximumf %77, %82 : vector<13x128xf32>
    %84 = vector.extract_strided_slice %83 {offsets = [0, 0], sizes = [12, 128], strides = [1, 1]} : vector<13x128xf32> to vector<12x128xf32>
    %85 = vector.extract_strided_slice %83 {offsets = [1, 0], sizes = [12, 128], strides = [1, 1]} : vector<13x128xf32> to vector<12x128xf32>
    %86 = arith.maximumf %84, %85 : vector<12x128xf32>
    %87 = vector.extract_strided_slice %86 {offsets = [0, 0], sizes = [10, 128], strides = [1, 1]} : vector<12x128xf32> to vector<10x128xf32>
    %88 = vector.extract_strided_slice %86 {offsets = [2, 0], sizes = [10, 128], strides = [1, 1]} : vector<12x128xf32> to vector<10x128xf32>
    %89 = arith.maximumf %87, %88 : vector<10x128xf32>
    %90 = vector.extract_strided_slice %89 {offsets = [0, 0], sizes = [6, 128], strides = [1, 1]} : vector<10x128xf32> to vector<6x128xf32>
    %91 = vector.extract_strided_slice %89 {offsets = [4, 0], sizes = [6, 128], strides = [1, 1]} : vector<10x128xf32> to vector<6x128xf32>
    %92 = arith.maximumf %90, %91 : vector<6x128xf32>
    %c3_48 = arith.constant 3 : index
    %c0_49 = arith.constant 0 : index
    %c0_50 = arith.constant 0 : index
    %93 = vector.load %arg2[%c3_48, %c0_49, %c0_50] : memref<7x6x128xf32, #tpu.memory_space<vmem>>, vector<1x6x128xf32>
    %94 = vector.shape_cast %93 : vector<1x6x128xf32> to vector<6x128xf32>
    %95 = vector.shape_cast %92 : vector<6x128xf32> to vector<1x6x128xf32>
    tpu.vector_store %arg2[%c3_48, %c0_49, %c0_50], %95 {strides = array<i32>} : memref<7x6x128xf32, #tpu.memory_space<vmem>>, vector<1x6x128xf32>,
    %96 = arith.maximumf %15, %63 : vector<13x128xf32>
    %c8_51 = arith.constant 8 : index
    %c0_52 = arith.constant 0 : index
    %c0_53 = arith.constant 0 : index
    %97 = vector.load %arg1[%c8_51, %c0_52, %c0_53] : memref<12x13x128xf32, #tpu.memory_space<vmem>>, vector<1x13x128xf32>
    %98 = vector.shape_cast %97 : vector<1x13x128xf32> to vector<13x128xf32>
    %c9 = arith.constant 9 : index
    %c0_54 = arith.constant 0 : index
    %c0_55 = arith.constant 0 : index
    %99 = vector.load %arg1[%c9, %c0_54, %c0_55] : memref<12x13x128xf32, #tpu.memory_space<vmem>>, vector<1x13x128xf32>
    %100 = vector.shape_cast %99 : vector<1x13x128xf32> to vector<13x128xf32>
    %101 = arith.maximumf %98, %100 : vector<13x128xf32>
    %102 = arith.maximumf %96, %101 : vector<13x128xf32>
    %103 = vector.extract_strided_slice %102 {offsets = [0, 0], sizes = [12, 128], strides = [1, 1]} : vector<13x128xf32> to vector<12x128xf32>
    %104 = vector.extract_strided_slice %102 {offsets = [1, 0], sizes = [12, 128], strides = [1, 1]} : vector<13x128xf32> to vector<12x128xf32>
    %105 = arith.maximumf %103, %104 : vector<12x128xf32>
    %106 = vector.extract_strided_slice %105 {offsets = [0, 0], sizes = [10, 128], strides = [1, 1]} : vector<12x128xf32> to vector<10x128xf32>
    %107 = vector.extract_strided_slice %105 {offsets = [2, 0], sizes = [10, 128], strides = [1, 1]} : vector<12x128xf32> to vector<10x128xf32>
    %108 = arith.maximumf %106, %107 : vector<10x128xf32>
    %109 = vector.extract_strided_slice %108 {offsets = [0, 0], sizes = [6, 128], strides = [1, 1]} : vector<10x128xf32> to vector<6x128xf32>
    %110 = vector.extract_strided_slice %108 {offsets = [4, 0], sizes = [6, 128], strides = [1, 1]} : vector<10x128xf32> to vector<6x128xf32>
    %111 = arith.maximumf %109, %110 : vector<6x128xf32>
    %c4_56 = arith.constant 4 : index
    %c0_57 = arith.constant 0 : index
    %c0_58 = arith.constant 0 : index
    %112 = vector.load %arg2[%c4_56, %c0_57, %c0_58] : memref<7x6x128xf32, #tpu.memory_space<vmem>>, vector<1x6x128xf32>
    %113 = vector.shape_cast %112 : vector<1x6x128xf32> to vector<6x128xf32>
    %114 = vector.shape_cast %111 : vector<6x128xf32> to vector<1x6x128xf32>
    tpu.vector_store %arg2[%c4_56, %c0_57, %c0_58], %114 {strides = array<i32>} : memref<7x6x128xf32, #tpu.memory_space<vmem>>, vector<1x6x128xf32>,
    %115 = arith.maximumf %44, %82 : vector<13x128xf32>
    %c9_59 = arith.constant 9 : index
    %c0_60 = arith.constant 0 : index
    %c0_61 = arith.constant 0 : index
    %116 = vector.load %arg1[%c9_59, %c0_60, %c0_61] : memref<12x13x128xf32, #tpu.memory_space<vmem>>, vector<1x13x128xf32>
    %117 = vector.shape_cast %116 : vector<1x13x128xf32> to vector<13x128xf32>
    %c10 = arith.constant 10 : index
    %c0_62 = arith.constant 0 : index
    %c0_63 = arith.constant 0 : index
    %118 = vector.load %arg1[%c10, %c0_62, %c0_63] : memref<12x13x128xf32, #tpu.memory_space<vmem>>, vector<1x13x128xf32>
    %119 = vector.shape_cast %118 : vector<1x13x128xf32> to vector<13x128xf32>
    %120 = arith.maximumf %117, %119 : vector<13x128xf32>
    %121 = arith.maximumf %115, %120 : vector<13x128xf32>
    %122 = vector.extract_strided_slice %121 {offsets = [0, 0], sizes = [12, 128], strides = [1, 1]} : vector<13x128xf32> to vector<12x128xf32>
    %123 = vector.extract_strided_slice %121 {offsets = [1, 0], sizes = [12, 128], strides = [1, 1]} : vector<13x128xf32> to vector<12x128xf32>
    %124 = arith.maximumf %122, %123 : vector<12x128xf32>
    %125 = vector.extract_strided_slice %124 {offsets = [0, 0], sizes = [10, 128], strides = [1, 1]} : vector<12x128xf32> to vector<10x128xf32>
    %126 = vector.extract_strided_slice %124 {offsets = [2, 0], sizes = [10, 128], strides = [1, 1]} : vector<12x128xf32> to vector<10x128xf32>
    %127 = arith.maximumf %125, %126 : vector<10x128xf32>
    %128 = vector.extract_strided_slice %127 {offsets = [0, 0], sizes = [6, 128], strides = [1, 1]} : vector<10x128xf32> to vector<6x128xf32>
    %129 = vector.extract_strided_slice %127 {offsets = [4, 0], sizes = [6, 128], strides = [1, 1]} : vector<10x128xf32> to vector<6x128xf32>
    %130 = arith.maximumf %128, %129 : vector<6x128xf32>
    %c5_64 = arith.constant 5 : index
    %c0_65 = arith.constant 0 : index
    %c0_66 = arith.constant 0 : index
    %131 = vector.load %arg2[%c5_64, %c0_65, %c0_66] : memref<7x6x128xf32, #tpu.memory_space<vmem>>, vector<1x6x128xf32>
    %132 = vector.shape_cast %131 : vector<1x6x128xf32> to vector<6x128xf32>
    %133 = vector.shape_cast %130 : vector<6x128xf32> to vector<1x6x128xf32>
    tpu.vector_store %arg2[%c5_64, %c0_65, %c0_66], %133 {strides = array<i32>} : memref<7x6x128xf32, #tpu.memory_space<vmem>>, vector<1x6x128xf32>,
    %134 = arith.maximumf %63, %101 : vector<13x128xf32>
    %c10_67 = arith.constant 10 : index
    %c0_68 = arith.constant 0 : index
    %c0_69 = arith.constant 0 : index
    %135 = vector.load %arg1[%c10_67, %c0_68, %c0_69] : memref<12x13x128xf32, #tpu.memory_space<vmem>>, vector<1x13x128xf32>
    %136 = vector.shape_cast %135 : vector<1x13x128xf32> to vector<13x128xf32>
    %c11 = arith.constant 11 : index
    %c0_70 = arith.constant 0 : index
    %c0_71 = arith.constant 0 : index
    %137 = vector.load %arg1[%c11, %c0_70, %c0_71] : memref<12x13x128xf32, #tpu.memory_space<vmem>>, vector<1x13x128xf32>
    %138 = vector.shape_cast %137 : vector<1x13x128xf32> to vector<13x128xf32>
    %139 = arith.maximumf %136, %138 : vector<13x128xf32>
    %140 = arith.maximumf %134, %139 : vector<13x128xf32>
    %141 = vector.extract_strided_slice %140 {offsets = [0, 0], sizes = [12, 128], strides = [1, 1]} : vector<13x128xf32> to vector<12x128xf32>
    %142 = vector.extract_strided_slice %140 {offsets = [1, 0], sizes = [12, 128], strides = [1, 1]} : vector<13x128xf32> to vector<12x128xf32>
    %143 = arith.maximumf %141, %142 : vector<12x128xf32>
    %144 = vector.extract_strided_slice %143 {offsets = [0, 0], sizes = [10, 128], strides = [1, 1]} : vector<12x128xf32> to vector<10x128xf32>
    %145 = vector.extract_strided_slice %143 {offsets = [2, 0], sizes = [10, 128], strides = [1, 1]} : vector<12x128xf32> to vector<10x128xf32>
    %146 = arith.maximumf %144, %145 : vector<10x128xf32>
    %147 = vector.extract_strided_slice %146 {offsets = [0, 0], sizes = [6, 128], strides = [1, 1]} : vector<10x128xf32> to vector<6x128xf32>
    %148 = vector.extract_strided_slice %146 {offsets = [4, 0], sizes = [6, 128], strides = [1, 1]} : vector<10x128xf32> to vector<6x128xf32>
    %149 = arith.maximumf %147, %148 : vector<6x128xf32>
    %c6_72 = arith.constant 6 : index
    %c0_73 = arith.constant 0 : index
    %c0_74 = arith.constant 0 : index
    %150 = vector.load %arg2[%c6_72, %c0_73, %c0_74] : memref<7x6x128xf32, #tpu.memory_space<vmem>>, vector<1x6x128xf32>
    %151 = vector.shape_cast %150 : vector<1x6x128xf32> to vector<6x128xf32>
    %152 = vector.shape_cast %149 : vector<6x128xf32> to vector<1x6x128xf32>
    tpu.vector_store %arg2[%c6_72, %c0_73, %c0_74], %152 {strides = array<i32>} : memref<7x6x128xf32, #tpu.memory_space<vmem>>, vector<1x6x128xf32>,
    return
  }
  func.func @transform_0(%arg0: i32) -> (i32, i32, i32) {
    %c0_i32 = arith.constant 0 : i32
    %c0_i32_0 = arith.constant 0 : i32
    %c0_i32_1 = arith.constant 0 : i32
    return %c0_i32, %c0_i32_0, %arg0 : i32, i32, i32
  }
  func.func @transform_1(%arg0: i32) -> (i32, i32, i32) {
    %c0_i32 = arith.constant 0 : i32
    %c0_i32_0 = arith.constant 0 : i32
    %c0_i32_1 = arith.constant 0 : i32
    return %c0_i32, %c0_i32_0, %arg0 : i32, i32, i32
  }
}

</mosaic_0001>

<llo_original>
// kernel: maxpool2d_ceil_mode_true.1
$region0: #{maxpool2d_ceil_mode_true.1}
  #allocation0 [shape = 'u32[]', space=smem, size = 0x4, offset = 0x4, fixed_abs, tag = 'smem constant byte address 0x4 - core index']
  #allocation1 [shape = 'u32[144,128]{1,0:T(1,128)}', space=vmem, size = 0x12000, scoped, tag = 'internal scratch']
  %s0 = inlined_call_operand.vmem [shape: f32[12,13,128], index: 0, kind: input, shape index: {}]
  %s1 = inlined_call_operand.vmem [shape: f32[7,6,128], index: 1, kind: output, shape index: {}]
  %s2 = sld [smem:[#allocation0]]
  $region14: #{maxpool2d_ceil_mode_true.1} parent=0
    _
  %s4 = ssub.s32 1, %s2
  %s5 = scalar_select 0, %s4, %s2
  // Predicated region
  $region2: #{maxpool2d_ceil_mode_true.1} parent=0 // pred_check
    _
  $region3: #{maxpool2d_ceil_mode_true.1} parent=0 // pred_check_branch
    %7 = sbr.rel (0) target = $region5
  $region4: #{maxpool2d_ceil_mode_true.1} parent=0 // pred_region
    _
  $region5: #{maxpool2d_ceil_mode_true.1} parent=0 // pred_fallthru
    _
  %v8 = vld [vmem:[%s0] sm:$0xff]
  %v9 = vld [vmem:[%s0 + $0x8] sm:$0x1f]
  %s10 = scalar_lea.vmem %s0, 16
  %v11 = vld [vmem:[%s10] sm:$0xff]
  %v12 = vld [vmem:[%s10 + $0x8] sm:$0x1f]
  %v13 = vmax.f32 %v8, %v11
  %v14 = vmax.f32 %v9, %v12
  %s15 = scalar_lea.vmem %s0, 32
  %v16 = vld [vmem:[%s15] sm:$0xff]
  %v17 = vld [vmem:[%s15 + $0x8] sm:$0x1f]
  %s18 = scalar_lea.vmem %s0, 48
  %v19 = vld [vmem:[%s18] sm:$0xff]
  %v20 = vld [vmem:[%s18 + $0x8] sm:$0x1f]
  %v21 = vmax.f32 %v16, %v19
  %v22 = vmax.f32 %v17, %v20
  %v23 = vmax.f32 %v13, %v21
  %v24 = vmax.f32 %v14, %v22
  %s25 = scalar_lea.vmem %s0, 64
  %v26 = vld [vmem:[%s25] sm:$0xff]
  %v27 = vld [vmem:[%s25 + $0x8] sm:$0x1f]
  %s28 = scalar_lea.vmem %s0, 80
  %v29 = vld [vmem:[%s28] sm:$0xff]
  %v30 = vld [vmem:[%s28 + $0x8] sm:$0x1f]
  %v31 = vmax.f32 %v26, %v29
  %v32 = vmax.f32 %v27, %v30
  %v33 = vmax.f32 %v23, %v31
  %v34 = vmax.f32 %v24, %v32
  %vm37 = vcmask 1046528
  %v38 = vrot.slane %v33, 1
  %v39 = vrot.slane %v34, 1
  %v40 = vsel %vm37, %v38, %v39
  %v43 = vmax.f32 %v33, %v40
  %v44 = vmax.f32 %v34, %v39
  %vm47 = vcmask 1045504
  %v48 = vrot.slane %v43, 2
  %v49 = vrot.slane %v44, 2
  %v50 = vsel %vm47, %v48, %v49
  %v53 = vmax.f32 %v43, %v50
  %v54 = vmax.f32 %v44, %v49
  %vm57 = vcmask 1043456
  %v58 = vrot.slane %v53, 4
  %v59 = vrot.slane %v54, 4
  %v60 = vsel %vm57, %v58, %v59
  %v62 = vmax.f32 %v53, %v60
  %63 = vst [vmem:[%s1] sm:$0x3f] %v62
  %v64 = vld [vmem:[%s10] sm:$0xff]
  %v65 = vld [vmem:[%s10 + $0x8] sm:$0x1f]
  %v66 = vld [vmem:[%s15] sm:$0xff]
  %v67 = vld [vmem:[%s15 + $0x8] sm:$0x1f]
  %v68 = vmax.f32 %v64, %v66
  %v69 = vmax.f32 %v65, %v67
  %v70 = vld [vmem:[%s18] sm:$0xff]
  %v71 = vld [vmem:[%s18 + $0x8] sm:$0x1f]
  %v72 = vld [vmem:[%s25] sm:$0xff]
  %v73 = vld [vmem:[%s25 + $0x8] sm:$0x1f]
  %v74 = vmax.f32 %v70, %v72
  %v75 = vmax.f32 %v71, %v73
  %v76 = vmax.f32 %v68, %v74
  %v77 = vmax.f32 %v69, %v75
  %v78 = vld [vmem:[%s28] sm:$0xff]
  %v79 = vld [vmem:[%s28 + $0x8] sm:$0x1f]
  %s80 = scalar_lea.vmem %s0, 96
  %v81 = vld [vmem:[%s80] sm:$0xff]
  %v82 = vld [vmem:[%s80 + $0x8] sm:$0x1f]
  %v83 = vmax.f32 %v78, %v81
  %v84 = vmax.f32 %v79, %v82
  %v85 = vmax.f32 %v76, %v83
  %v86 = vmax.f32 %v77, %v84
  %v89 = vrot.slane %v85, 1
  %v90 = vrot.slane %v86, 1
  %v91 = vsel %vm37, %v89, %v90
  %v94 = vmax.f32 %v85, %v91
  %v95 = vmax.f32 %v86, %v90
  %v98 = vrot.slane %v94, 2
  %v99 = vrot.slane %v95, 2
  %v100 = vsel %vm47, %v98, %v99
  %v103 = vmax.f32 %v94, %v100
  %v104 = vmax.f32 %v95, %v99
  %v107 = vrot.slane %v103, 4
  %v108 = vrot.slane %v104, 4
  %v109 = vsel %vm57, %v107, %v108
  %v111 = vmax.f32 %v103, %v109
  %s112 = scalar_lea.vmem %s1, 8
  %113 = vst [vmem:[%s112] sm:$0x3f] %v111
  %v114 = vmax.f32 %v21, %v31
  %v115 = vmax.f32 %v22, %v32
  %v116 = vld [vmem:[%s80] sm:$0xff]
  %v117 = vld [vmem:[%s80 + $0x8] sm:$0x1f]
  %s118 = scalar_lea.vmem %s0, 112
  %v119 = vld [vmem:[%s118] sm:$0xff]
  %v120 = vld [vmem:[%s118 + $0x8] sm:$0x1f]
  %v121 = vmax.f32 %v116, %v119
  %v122 = vmax.f32 %v117, %v120
  %v123 = vmax.f32 %v114, %v121
  %v124 = vmax.f32 %v115, %v122
  %v127 = vrot.slane %v123, 1
  %v128 = vrot.slane %v124, 1
  %v129 = vsel %vm37, %v127, %v128
  %v132 = vmax.f32 %v123, %v129
  %v133 = vmax.f32 %v124, %v128
  %v136 = vrot.slane %v132, 2
  %v137 = vrot.slane %v133, 2
  %v138 = vsel %vm47, %v136, %v137
  %v141 = vmax.f32 %v132, %v138
  %v142 = vmax.f32 %v133, %v137
  %v145 = vrot.slane %v141, 4
  %v146 = vrot.slane %v142, 4
  %v147 = vsel %vm57, %v145, %v146
  %v149 = vmax.f32 %v141, %v147
  %s150 = scalar_lea.vmem %s1, 16
  %151 = vst [vmem:[%s150] sm:$0x3f] %v149
  %v152 = vmax.f32 %v74, %v83
  %v153 = vmax.f32 %v75, %v84
  %v154 = vld [vmem:[%s118] sm:$0xff]
  %v155 = vld [vmem:[%s118 + $0x8] sm:$0x1f]
  %s156 = scalar_lea.vmem %s0, 128
  %v157 = vld [vmem:[%s156] sm:$0xff]
  %v158 = vld [vmem:[%s156 + $0x8] sm:$0x1f]
  %v159 = vmax.f32 %v154, %v157
  %v160 = vmax.f32 %v155, %v158
  %v161 = vmax.f32 %v152, %v159
  %v162 = vmax.f32 %v153, %v160
  %v165 = vrot.slane %v161, 1
  %v166 = vrot.slane %v162, 1
  %v167 = vsel %vm37, %v165, %v166
  %v170 = vmax.f32 %v161, %v167
  %v171 = vmax.f32 %v162, %v166
  %v174 = vrot.slane %v170, 2
  %v175 = vrot.slane %v171, 2
  %v176 = vsel %vm47, %v174, %v175
  %v179 = vmax.f32 %v170, %v176
  %v180 = vmax.f32 %v171, %v175
  %v183 = vrot.slane %v179, 4
  %v184 = vrot.slane %v180, 4
  %v185 = vsel %vm57, %v183, %v184
  %v187 = vmax.f32 %v179, %v185
  %s188 = scalar_lea.vmem %s1, 24
  %189 = vst [vmem:[%s188] sm:$0x3f] %v187
  %v190 = vmax.f32 %v31, %v121
  %v191 = vmax.f32 %v32, %v122
  %v192 = vld [vmem:[%s156] sm:$0xff]
  %v193 = vld [vmem:[%s156 + $0x8] sm:$0x1f]
  %s194 = scalar_lea.vmem %s0, 144
  %v195 = vld [vmem:[%s194] sm:$0xff]
  %v196 = vld [vmem:[%s194 + $0x8] sm:$0x1f]
  %v197 = vmax.f32 %v192, %v195
  %v198 = vmax.f32 %v193, %v196
  %v199 = vmax.f32 %v190, %v197
  %v200 = vmax.f32 %v191, %v198
  %v203 = vrot.slane %v199, 1
  %v204 = vrot.slane %v200, 1
  %v205 = vsel %vm37, %v203, %v204
  %v208 = vmax.f32 %v199, %v205
  %v209 = vmax.f32 %v200, %v204
  %v212 = vrot.slane %v208, 2
  %v213 = vrot.slane %v209, 2
  %v214 = vsel %vm47, %v212, %v213
  %v217 = vmax.f32 %v208, %v214
  %v218 = vmax.f32 %v209, %v213
  %v221 = vrot.slane %v217, 4
  %v222 = vrot.slane %v218, 4
  %v223 = vsel %vm57, %v221, %v222
  %v225 = vmax.f32 %v217, %v223
  %s226 = scalar_lea.vmem %s1, 32
  %227 = vst [vmem:[%s226] sm:$0x3f] %v225
  %v228 = vmax.f32 %v83, %v159
  %v229 = vmax.f32 %v84, %v160
  %v230 = vld [vmem:[%s194] sm:$0xff]
  %v231 = vld [vmem:[%s194 + $0x8] sm:$0x1f]
  %s232 = scalar_lea.vmem %s0, 160
  %v233 = vld [vmem:[%s232] sm:$0xff]
  %v234 = vld [vmem:[%s232 + $0x8] sm:$0x1f]
  %v235 = vmax.f32 %v230, %v233
  %v236 = vmax.f32 %v231, %v234
  %v237 = vmax.f32 %v228, %v235
  %v238 = vmax.f32 %v229, %v236
  %v241 = vrot.slane %v237, 1
  %v242 = vrot.slane %v238, 1
  %v243 = vsel %vm37, %v241, %v242
  %v246 = vmax.f32 %v237, %v243
  %v247 = vmax.f32 %v238, %v242
  %v250 = vrot.slane %v246, 2
  %v251 = vrot.slane %v247, 2
  %v252 = vsel %vm47, %v250, %v251
  %v255 = vmax.f32 %v246, %v252
  %v256 = vmax.f32 %v247, %v251
  %v259 = vrot.slane %v255, 4
  %v260 = vrot.slane %v256, 4
  %v261 = vsel %vm57, %v259, %v260
  %v263 = vmax.f32 %v255, %v261
  %s264 = scalar_lea.vmem %s1, 40
  %265 = vst [vmem:[%s264] sm:$0x3f] %v263
  %v266 = vmax.f32 %v121, %v197
  %v267 = vmax.f32 %v122, %v198
  %v268 = vld [vmem:[%s232] sm:$0xff]
  %v269 = vld [vmem:[%s232 + $0x8] sm:$0x1f]
  %s270 = scalar_lea.vmem %s0, 176
  %v271 = vld [vmem:[%s270] sm:$0xff]
  %v272 = vld [vmem:[%s270 + $0x8] sm:$0x1f]
  %v273 = vmax.f32 %v268, %v271
  %v274 = vmax.f32 %v269, %v272
  %v275 = vmax.f32 %v266, %v273
  %v276 = vmax.f32 %v267, %v274
  %v279 = vrot.slane %v275, 1
  %v280 = vrot.slane %v276, 1
  %v281 = vsel %vm37, %v279, %v280
  %v284 = vmax.f32 %v275, %v281
  %v285 = vmax.f32 %v276, %v280
  %v288 = vrot.slane %v284, 2
  %v289 = vrot.slane %v285, 2
  %v290 = vsel %vm47, %v288, %v289
  %v293 = vmax.f32 %v284, %v290
  %v294 = vmax.f32 %v285, %v289
  %v297 = vrot.slane %v293, 4
  %v298 = vrot.slane %v294, 4
  %v299 = vsel %vm57, %v297, %v298
  %v301 = vmax.f32 %v293, %v299
  %s302 = scalar_lea.vmem %s1, 48
  %303 = vst [vmem:[%s302] sm:$0x3f] %v301
  // Predicated region
  $region6: #{maxpool2d_ceil_mode_true.1} parent=0 // pred_check
    _
  $region7: #{maxpool2d_ceil_mode_true.1} parent=0 // pred_check_branch
    %305 = sbr.rel (0) target = $region9
  $region8: #{maxpool2d_ceil_mode_true.1} parent=0 // pred_region
    _
  $region9: #{maxpool2d_ceil_mode_true.1} parent=0 // pred_fallthru
    _
  // Predicated region
  $region10: #{maxpool2d_ceil_mode_true.1} parent=0 // pred_check
    _
  $region11: #{maxpool2d_ceil_mode_true.1} parent=0 // pred_check_branch
    %307 = sbr.rel (0) target = $region13
  $region12: #{maxpool2d_ceil_mode_true.1} parent=0 // pred_region
    _
  $region13: #{maxpool2d_ceil_mode_true.1} parent=0 // pred_fallthru
    _

</llo_original>
